<compile_context>
chip_gen: v7x
topology: tpu7x:2x2x1
jax: 0.10.0
libtpu: 0.0.40
codegen_flags: <defaults>
</compile_context>

<pallas_src>
import functools

import jax
import jax.numpy as jnp
from jax.experimental import pallas as pl
from jax.experimental.pallas import tpu as pltpu

_VMEM_LIMIT_BYTES = 48 * 1024 * 1024  # headroom below v7x's 64 MiB physical VMEM


def _compiler_params():
    return pltpu.CompilerParams(
        dimension_semantics=("parallel",),
        vmem_limit_bytes=_VMEM_LIMIT_BYTES,
    )


# ----------------------------------------------------------------------------
# Fused 3x3 "same" conv kernel (halo conv: 9 shifted MXU matmuls, no im2col)
# ----------------------------------------------------------------------------
def _conv3x3_kernel(x_ref, w_ref, b_ref, o_ref, *, W, relu):
    """x_ref: (1, (H+3)*(W+2), Cin) f32 (zero-padded, row-flattened image)
    w_ref: (9, Cin, Cout) bf16; b_ref: (1, Cout) f32
    o_ref: (1, H*(W+2), Cout) f32 (the last 2 columns of each row are junk)."""
    Wp = W + 2
    P_out = o_ref.shape[1]
    Cout = o_ref.shape[-1]
    acc = jnp.zeros((P_out, Cout), jnp.float32)
    for dy in range(3):
        for dx in range(3):
            off = dy * Wp + dx
            patch = x_ref[0, off:off + P_out, :].astype(jnp.bfloat16)
            acc = acc + jnp.dot(patch, w_ref[dy * 3 + dx],
                                preferred_element_type=jnp.float32)
    acc = acc + b_ref[...]
    if relu:
        acc = jnp.maximum(acc, 0.0)
    o_ref[0] = acc


def conv3x3(x, w, b, relu=False):
    """3x3 'same' conv, NHWC.  w: (9,Cin,Cout) bf16, b: (1,Cout) f32."""
    B, H, W, Cin = x.shape
    Cout = w.shape[-1]
    Wp = W + 2
    P_in = (H + 3) * Wp
    P_out = H * Wp
    xp = jnp.pad(x, ((0, 0), (1, 2), (1, 1), (0, 0))).reshape(B, P_in, Cin)
    out_flat = pl.pallas_call(
        functools.partial(_conv3x3_kernel, W=W, relu=relu),
        out_shape=jax.ShapeDtypeStruct((B, P_out, Cout), jnp.float32),
        grid=(B,),
        in_specs=[
            pl.BlockSpec((1, P_in, Cin), lambda i: (i, 0, 0)),
            pl.BlockSpec((9, Cin, Cout), lambda i: (0, 0, 0)),
            pl.BlockSpec((1, Cout), lambda i: (0, 0)),
        ],
        out_specs=pl.BlockSpec((1, P_out, Cout), lambda i: (i, 0, 0)),
        compiler_params=_compiler_params(),
    )(xp, w, b)
    return out_flat.reshape(B, H, Wp, Cout)[:, :, :W, :]


# ----------------------------------------------------------------------------
# Fused ConvLSTM cell tail: gate conv + gate update + prediction head
# ----------------------------------------------------------------------------
def _cell_tail_kernel(gi_ref, c_ref, wg_ref, bg_ref, wp_ref, bp_ref,
                      h_ref, cn_ref, p_ref, hpad_ref, *, W):
    """gi_ref : (1,(H+3)*(W+2),2*hd) f32 — padded+flattened concat([decoder, h_prev])
    c_ref  : (1,H*(W+2),hd) f32        — c_prev on the (row-flattened) output grid
    wg_ref : (4,9,2*hd,hd) bf16        — per-gate conv weights (i,f,o,g); bg_ref (4,1,hd)
    wp_ref : (9,hd,out) bf16; bp_ref (1,out)
    outputs: h_new, c_new (1,H*(W+2),hd) and pred (1,H*(W+2),out)  (junk cols sliced in XLA)
    hpad_ref: VMEM scratch ((H+3)*(W+2),hd) bf16 — zero-haloed h for the fused pred conv."""
    Wp = W + 2
    P_out = c_ref.shape[1]
    hd = c_ref.shape[-1]
    out_dim = p_ref.shape[-1]

    # gate conv: load the 9 shifted patches once, accumulate the 4 gates with
    # separate weight slabs (no lane-slicing of a packed 4*hd output).
    patches = [gi_ref[0, dy * Wp + dx: dy * Wp + dx + P_out, :].astype(jnp.bfloat16)
               for dy in range(3) for dx in range(3)]

    def gate(g_idx):
        acc = jnp.zeros((P_out, hd), jnp.float32)
        for t in range(9):
            acc = acc + jnp.dot(patches[t], wg_ref[g_idx, t],
                                preferred_element_type=jnp.float32)
        return acc + bg_ref[g_idx]

    def sig(z):  # exp on EUP + approx reciprocal keeps the VALU slot free
        return pl.reciprocal(1.0 + jnp.exp(-z), approx=True)

    i_g = sig(gate(0))
    f_g = sig(gate(1))
    o_g = sig(gate(2))
    g_g = jnp.tanh(gate(3))

    c_new = f_g * c_ref[0] + i_g * g_g
    h_new = o_g * jnp.tanh(c_new)

    # zero the 2 junk right-pad columns so the fused prediction conv below sees
    # a correctly zero-padded hidden state.
    col = jax.lax.broadcasted_iota(jnp.int32, (P_out, hd), 0) % Wp
    h_new = jnp.where(col < W, h_new, 0.0)

    h_ref[0] = h_new
    cn_ref[0] = c_new

    # fused prediction head: re-embed h_new into a zero halo (VMEM scratch) and
    # run the second 9-tap conv without leaving the kernel.
    hpad_ref[...] = jnp.zeros(hpad_ref.shape, hpad_ref.dtype)
    hpad_ref[Wp + 1: Wp + 1 + P_out, :] = h_new.astype(hpad_ref.dtype)
    acc = jnp.zeros((P_out, out_dim), jnp.float32)
    for dy in range(3):
        for dx in range(3):
            off = dy * Wp + dx
            acc = acc + jnp.dot(hpad_ref[off: off + P_out, :], wp_ref[dy * 3 + dx],
                                preferred_element_type=jnp.float32)
    p_ref[0] = jnp.maximum(acc + bp_ref[...], 0.0)


def cell_tail(gate_p, pred_p, d, h_prev, c_prev):
    B, H, W, hd = h_prev.shape
    Wp = W + 2
    P_in = (H + 3) * Wp
    P_out = H * Wp
    out_dim = pred_p["w"].shape[-1]

    gi = jnp.concatenate([d, h_prev], axis=-1)
    gi_flat = jnp.pad(gi, ((0, 0), (1, 2), (1, 1), (0, 0))).reshape(B, P_in, 2 * hd)
    c_flat = jnp.pad(c_prev, ((0, 0), (0, 0), (0, 2), (0, 0))).reshape(B, P_out, hd)

    h_flat, cn_flat, p_flat = pl.pallas_call(
        functools.partial(_cell_tail_kernel, W=W),
        out_shape=(jax.ShapeDtypeStruct((B, P_out, hd), jnp.float32),
                   jax.ShapeDtypeStruct((B, P_out, hd), jnp.float32),
                   jax.ShapeDtypeStruct((B, P_out, out_dim), jnp.float32)),
        grid=(B,),
        in_specs=[
            pl.BlockSpec((1, P_in, 2 * hd), lambda i: (i, 0, 0)),
            pl.BlockSpec((1, P_out, hd), lambda i: (i, 0, 0)),
            pl.BlockSpec((4, 9, 2 * hd, hd), lambda i: (0, 0, 0, 0)),
            pl.BlockSpec((4, 1, hd), lambda i: (0, 0, 0)),
            pl.BlockSpec((9, hd, out_dim), lambda i: (0, 0, 0)),
            pl.BlockSpec((1, out_dim), lambda i: (0, 0)),
        ],
        out_specs=(pl.BlockSpec((1, P_out, hd), lambda i: (i, 0, 0)),
                   pl.BlockSpec((1, P_out, hd), lambda i: (i, 0, 0)),
                   pl.BlockSpec((1, P_out, out_dim), lambda i: (i, 0, 0))),
        scratch_shapes=[pltpu.VMEM((P_in, hd), jnp.bfloat16)],
        compiler_params=_compiler_params(),
    )(gi_flat, c_flat, gate_p["w"], gate_p["b"], pred_p["w"], pred_p["b"])

    def unflat(a):
        return a.reshape(B, H, Wp, a.shape[-1])[:, :, :W, :]

    return unflat(p_flat), unflat(h_flat), unflat(cn_flat)


# ----------------------------------------------------------------------------
# Pos/neg error split (lane-dense: flattened spatial on the lane axis)
# ----------------------------------------------------------------------------
def _error_kernel(t_ref, p_ref, pos_ref, neg_ref):
    d = t_ref[...] - p_ref[...]
    pos_ref[...] = jnp.maximum(d, 0.0)
    neg_ref[...] = jnp.maximum(-d, 0.0)


def error_split(target, pred):
    """E = concat([relu(target - pred), relu(pred - target)], channel)."""
    B, H, W, C = target.shape
    N = H * W * C
    pos, neg = pl.pallas_call(
        _error_kernel,
        out_shape=(jax.ShapeDtypeStruct((B, 1, N), jnp.float32),
                   jax.ShapeDtypeStruct((B, 1, N), jnp.float32)),
        grid=(B,),
        in_specs=[pl.BlockSpec((1, 1, N), lambda i: (i, 0, 0)),
                  pl.BlockSpec((1, 1, N), lambda i: (i, 0, 0))],
        out_specs=(pl.BlockSpec((1, 1, N), lambda i: (i, 0, 0)),
                   pl.BlockSpec((1, 1, N), lambda i: (i, 0, 0))),
        compiler_params=_compiler_params(),
    )(target.reshape(B, 1, N), pred.reshape(B, 1, N))
    pos = pos.reshape(B, H, W, C)
    neg = neg.reshape(B, H, W, C)
    return jnp.concatenate([pos, neg], axis=-1)


# ----------------------------------------------------------------------------
# Resize glue (matches torch semantics)
# ----------------------------------------------------------------------------
def upsample2_nearest(x):
    return jnp.repeat(jnp.repeat(x, 2, axis=1), 2, axis=2)


def upsample2_bilinear_align_corners(x):
    """nn.Upsample(scale_factor=2, mode='bilinear', align_corners=True), NHWC."""
    B, H, W, C = x.shape

    def axis_coords(n_in, n_out):
        if n_in == 1:
            lo = jnp.zeros((n_out,), jnp.int32)
            return lo, lo, jnp.zeros((n_out,), jnp.float32)
        pos = jnp.arange(n_out, dtype=jnp.float32) * (n_in - 1) / (n_out - 1)
        lo = jnp.floor(pos).astype(jnp.int32)
        hi = jnp.minimum(lo + 1, n_in - 1)
        return lo, hi, pos - lo.astype(jnp.float32)

    ylo, yhi, yf = axis_coords(H, 2 * H)
    xlo, xhi, xf = axis_coords(W, 2 * W)
    x_y0 = x[:, ylo]
    x_y1 = x[:, yhi]

    def blend_x(v):
        return (v[:, :, xlo] * (1.0 - xf)[None, None, :, None]
                + v[:, :, xhi] * xf[None, None, :, None])

    top = blend_x(x_y0)
    bot = blend_x(x_y1)
    return top * (1.0 - yf)[None, :, None, None] + bot * yf[None, :, None, None]


# ----------------------------------------------------------------------------
# Synthetic Codec-LSTM cell (shape-compatible with MSPNet's ConvLSTMCell usage)
# ----------------------------------------------------------------------------
def _conv_init(key, cin, cout):
    kw, kb = jax.random.split(key)
    w = (jax.random.normal(kw, (9, cin, cout), jnp.float32)
         / jnp.sqrt(9.0 * cin)).astype(jnp.bfloat16)
    b = jax.random.normal(kb, (1, cout), jnp.float32) * 0.01
    return {"w": w, "b": b}


def _gate_init(key, cin, hd):
    kw, kb = jax.random.split(key)
    w = (jax.random.normal(kw, (4, 9, cin, hd), jnp.float32)
         / jnp.sqrt(9.0 * cin)).astype(jnp.bfloat16)
    b = jax.random.normal(kb, (4, 1, hd), jnp.float32) * 0.01
    return {"w": w, "b": b}


def init_convlstm_cell(key, input_dim, hidden_dim, channels, higher_channel, out_dim):
    channels = list(channels)
    keys = jax.random.split(key, 2 * len(channels) + 2)
    enc, cin = [], input_dim
    for i, c in enumerate(channels):
        enc.append(_conv_init(keys[i], cin, c))
        cin = c
    dchannels = list(reversed(channels[:-1])) + [hidden_dim]
    dec, cin = [], channels[-1]
    for i, c in enumerate(dchannels):
        dec.append(_conv_init(keys[len(channels) + i], cin, c))
        cin = c
    gate = _gate_init(keys[-2], 2 * hidden_dim, hidden_dim)
    pred = _conv_init(keys[-1], hidden_dim, out_dim)
    return {"enc": enc, "dec": dec, "gate": gate, "pred": pred,
            "channels": tuple(channels), "hidden_dim": hidden_dim,
            "higher_channel": higher_channel}


def convlstm_cell_forward(params, x, hidden, higher_h):
    """x: (B,H,W,input_dim) at this pyramid level.  Returns (pred, (h,c), current_h)."""
    h_prev, c_prev = hidden
    channels = params["channels"]
    k = len(channels)

    # Encoder (strided-conv pyramid); inject coarser-level encoder feature where
    # the channel counts line up (cell_channels[-2] == higher_channel).
    e = x
    for i, conv in enumerate(params["enc"]):
        e = conv3x3(e, conv["w"], conv["b"], relu=True)
        e = e[:, ::2, ::2, :]  # stride-2 downsample
        if higher_h is not None and i == k - 2:
            up = upsample2_nearest(higher_h)
            assert up.shape == e.shape, (up.shape, e.shape)
            e = e + up
    current_h = e  # deepest encoder feature: channels[-1] channels

    # Decoder back to the level's full resolution -> hidden_dim channels.
    d = e
    for conv in params["dec"]:
        d = upsample2_nearest(d)
        d = conv3x3(d, conv["w"], conv["b"], relu=True)

    # Fused gate conv + ConvLSTM state update + prediction head (single kernel).
    pred, h_new, c_new = cell_tail(params["gate"], params["pred"], d, h_prev, c_prev)
    return pred, (h_new, c_new), current_h


# ----------------------------------------------------------------------------
# MSPNet
# ----------------------------------------------------------------------------
class MSPNetPallas:
    def __init__(self, channels, layers, in_ch, hidden_dim, key):
        assert len(channels) >= layers
        self.n_layers = layers
        self.hidden_dim = hidden_dim
        self.channels = list(channels)
        self.in_ch = in_ch
        self.use_higher_enc_info = True
        keys = jax.random.split(key, layers)
        self.cells = {}
        for l in range(1, layers - 1):
            self.cells["ELHcell{}".format(l)] = init_convlstm_cell(
                keys[l], in_ch * 5, hidden_dim, channels[:-l],
                channels[:-l][-2], in_ch)
        self.cells["ELcell"] = init_convlstm_cell(
            keys[layers - 1], in_ch * 4, hidden_dim,
            channels[:-(layers - 1)], 0, in_ch)
        self.cells["EHcell"] = init_convlstm_cell(
            keys[0], in_ch * 3, hidden_dim, channels, channels[-2], in_ch)

    def forward(self, inp, pred_steps, mode):
        assert mode in ["train", "test", "adv_train"]
        B, T, C, H, W = inp.shape
        assert C == self.in_ch
        x = jnp.transpose(inp, (0, 1, 3, 4, 2)).astype(jnp.float32)  # NHWC frames

        pred_seq = [None] * self.n_layers
        hidden_seq = [None] * self.n_layers
        error_seq = [None] * self.n_layers
        hh, ww = H, W
        for l in range(self.n_layers):
            error_seq[l] = jnp.zeros((B, hh, ww, 2 * self.in_ch), jnp.float32)
            pred_seq[l] = jnp.zeros((B, hh, ww, self.in_ch), jnp.float32)
            hidden_seq[l] = (jnp.zeros((B, hh, ww, self.hidden_dim), jnp.float32),
                             jnp.zeros((B, hh, ww, self.hidden_dim), jnp.float32))
            hh //= 2
            ww //= 2

        lambda_l = 1.0
        total_loss = jnp.zeros((), jnp.float32)
        predictions = []
        real_t = (T - pred_steps) if mode in ("train", "adv_train") else T

        for t in range(real_t + pred_steps):
            higher_h = None
            for l in reversed(range(self.n_layers)):
                if l == 0:
                    cell = self.cells["EHcell"]
                    higher_pred = upsample2_bilinear_align_corners(pred_seq[l + 1])
                    temp = jnp.concatenate([error_seq[l], higher_pred], axis=-1)
                elif l == self.n_layers - 1:
                    cell = self.cells["ELcell"]
                    lower_error = error_seq[l - 1][:, ::2, ::2, :]  # nearest 0.5x
                    temp = jnp.concatenate([error_seq[l], lower_error], axis=-1)
                else:
                    cell = self.cells["ELHcell{}".format(l)]
                    lower_error = error_seq[l - 1][:, ::2, ::2, :]
                    higher_pred = upsample2_bilinear_align_corners(pred_seq[l + 1])
                    temp = jnp.concatenate([error_seq[l], lower_error, higher_pred],
                                           axis=-1)
                pred, next_hid, current_h = convlstm_cell_forward(
                    cell, temp, hidden_seq[l], higher_h)
                if l != 0:
                    higher_h = current_h if self.use_higher_enc_info else None
                pred_seq[l] = pred
                hidden_seq[l] = next_hid
                if l == 0 and t >= real_t and mode == "test":
                    predictions.append(pred)
                if mode == "adv_train" and l == 0:
                    predictions.append(pred)

            cur_target = x[:, t] if t < real_t else pred_seq[0]
            for l in range(self.n_layers):
                cur_frame_l = cur_target[:, ::2 ** l, ::2 ** l, :]  # nearest resize
                error_seq[l] = error_split(cur_frame_l, pred_seq[l])

            if mode in ("train", "adv_train"):
                cur_target = x[:, t]
                for l in range(self.n_layers):
                    cur_target_l = cur_target[:, ::2 ** l, ::2 ** l, :]
                    loss = jnp.sum((pred_seq[l] - cur_target_l) ** 2)
                    lambda_t = 0.0 if t == 0 else 1.0
                    total_loss = total_loss + loss * lambda_l * lambda_t

        # return predictions in PyTorch NCHW convention
        predictions = [jnp.transpose(p, (0, 3, 1, 2)) for p in predictions]
        return predictions, total_loss


# ----------------------------------------------------------------------------
if __name__ == "__main__":
    key = jax.random.PRNGKey(0)
    k_param, k_inp = jax.random.split(key)

    channels = [4, 8, 8, 8]
    layers = 3
    in_ch = 1
    hidden_dim = 8
    B, T, H, W = 2, 3, 16, 16

    net = MSPNetPallas(channels, layers, in_ch, hidden_dim, k_param)
    inp = jax.random.uniform(k_inp, (B, T, in_ch, H, W), jnp.float32)

    # train mode: exercises the full multi-scale recurrence + sum-of-squares loss
    _, loss = net.forward(inp, pred_steps=1, mode="train")
    loss = jax.block_until_ready(loss)
    assert bool(jnp.isfinite(loss))

    # test mode: produces future-frame predictions
    preds, _ = net.forward(inp, pred_steps=1, mode="test")
    preds = jax.block_until_ready(preds)
    assert len(preds) == 1 and preds[0].shape == (B, in_ch, H, W)

    print("KERNEL_OK")
</pallas_src>

<mosaic_0001>
module attributes {stable_mosaic.version = 11 : i64} {
  func.func @_conv3x3_kernel(%arg0: i32, %arg1: memref<1x42x4xf32, #tpu.memory_space<vmem>>, %arg2: memref<9x4x4xbf16, #tpu.memory_space<vmem>>, %arg3: memref<1x4xf32, #tpu.memory_space<vmem>>, %arg4: memref<1x24x4xf32, #tpu.memory_space<vmem>>) attributes {dimension_semantics = [#tpu.dimension_semantics<parallel>], iteration_bounds = array<i64: 2>, scalar_prefetch = 0 : i64, scratch_operands = 0 : i64, tpu.core_type = #tpu.core_type<tc>, window_params = [{transform_indices = @transform_0, window_bounds = array<i64: 1, 42, 4>}, {pipeline_mode = #tpu.pipeline_mode<synchronous>, transform_indices = @transform_1, window_bounds = array<i64: 9, 4, 4>}, {pipeline_mode = #tpu.pipeline_mode<synchronous>, transform_indices = @transform_2, window_bounds = array<i64: 1, 4>}, {transform_indices = @transform_3, window_bounds = array<i64: 1, 24, 4>}]} {
    %cst = arith.constant 0.000000e+00 : f32
    %0 = vector.broadcast %cst : f32 to vector<24x4xf32>
    %c0 = arith.constant 0 : index
    %c0_0 = arith.constant 0 : index
    %c0_1 = arith.constant 0 : index
    %1 = vector.load %arg1[%c0, %c0_0, %c0_1] : memref<1x42x4xf32, #tpu.memory_space<vmem>>, vector<1x24x4xf32>
    %2 = vector.shape_cast %1 : vector<1x24x4xf32> to vector<24x4xf32>
    %3 = arith.truncf %2 : vector<24x4xf32> to vector<24x4xbf16>
    %c0_2 = arith.constant 0 : index
    %c0_3 = arith.constant 0 : index
    %c0_4 = arith.constant 0 : index
    %4 = vector.load %arg2[%c0_2, %c0_3, %c0_4] : memref<9x4x4xbf16, #tpu.memory_space<vmem>>, vector<1x4x4xbf16>
    %5 = vector.shape_cast %4 : vector<1x4x4xbf16> to vector<4x4xbf16>
    %cst_5 = arith.constant dense<0.000000e+00> : vector<24x4xf32>
    %6 = tpu.matmul %3, %5, %cst_5 {dimension_numbers = #tpu.dot_dimension_numbers<[1], [0], [0], [1], [0, 0, 1, 1], [], []>} : vector<24x4xbf16>, vector<4x4xbf16>, vector<24x4xf32> -> vector<24x4xf32>
    %7 = arith.addf %0, %6 : vector<24x4xf32>
    %c0_6 = arith.constant 0 : index
    %c1 = arith.constant 1 : index
    %c0_7 = arith.constant 0 : index
    %8 = vector.load %arg1[%c0_6, %c1, %c0_7] : memref<1x42x4xf32, #tpu.memory_space<vmem>>, vector<1x24x4xf32>
    %9 = vector.shape_cast %8 : vector<1x24x4xf32> to vector<24x4xf32>
    %10 = arith.truncf %9 : vector<24x4xf32> to vector<24x4xbf16>
    %c1_8 = arith.constant 1 : index
    %c0_9 = arith.constant 0 : index
    %c0_10 = arith.constant 0 : index
    %11 = vector.load %arg2[%c1_8, %c0_9, %c0_10] : memref<9x4x4xbf16, #tpu.memory_space<vmem>>, vector<1x4x4xbf16>
    %12 = vector.shape_cast %11 : vector<1x4x4xbf16> to vector<4x4xbf16>
    %cst_11 = arith.constant dense<0.000000e+00> : vector<24x4xf32>
    %13 = tpu.matmul %10, %12, %cst_11 {dimension_numbers = #tpu.dot_dimension_numbers<[1], [0], [0], [1], [0, 0, 1, 1], [], []>} : vector<24x4xbf16>, vector<4x4xbf16>, vector<24x4xf32> -> vector<24x4xf32>
    %14 = arith.addf %7, %13 : vector<24x4xf32>
    %c0_12 = arith.constant 0 : index
    %c2 = arith.constant 2 : index
    %c0_13 = arith.constant 0 : index
    %15 = vector.load %arg1[%c0_12, %c2, %c0_13] : memref<1x42x4xf32, #tpu.memory_space<vmem>>, vector<1x24x4xf32>
    %16 = vector.shape_cast %15 : vector<1x24x4xf32> to vector<24x4xf32>
    %17 = arith.truncf %16 : vector<24x4xf32> to vector<24x4xbf16>
    %c2_14 = arith.constant 2 : index
    %c0_15 = arith.constant 0 : index
    %c0_16 = arith.constant 0 : index
    %18 = vector.load %arg2[%c2_14, %c0_15, %c0_16] : memref<9x4x4xbf16, #tpu.memory_space<vmem>>, vector<1x4x4xbf16>
    %19 = vector.shape_cast %18 : vector<1x4x4xbf16> to vector<4x4xbf16>
    %cst_17 = arith.constant dense<0.000000e+00> : vector<24x4xf32>
    %20 = tpu.matmul %17, %19, %cst_17 {dimension_numbers = #tpu.dot_dimension_numbers<[1], [0], [0], [1], [0, 0, 1, 1], [], []>} : vector<24x4xbf16>, vector<4x4xbf16>, vector<24x4xf32> -> vector<24x4xf32>
    %21 = arith.addf %14, %20 : vector<24x4xf32>
    %c0_18 = arith.constant 0 : index
    %c6 = arith.constant 6 : index
    %c0_19 = arith.constant 0 : index
    %22 = vector.load %arg1[%c0_18, %c6, %c0_19] : memref<1x42x4xf32, #tpu.memory_space<vmem>>, vector<1x24x4xf32>
    %23 = vector.shape_cast %22 : vector<1x24x4xf32> to vector<24x4xf32>
    %24 = arith.truncf %23 : vector<24x4xf32> to vector<24x4xbf16>
    %c3 = arith.constant 3 : index
    %c0_20 = arith.constant 0 : index
    %c0_21 = arith.constant 0 : index
    %25 = vector.load %arg2[%c3, %c0_20, %c0_21] : memref<9x4x4xbf16, #tpu.memory_space<vmem>>, vector<1x4x4xbf16>
    %26 = vector.shape_cast %25 : vector<1x4x4xbf16> to vector<4x4xbf16>
    %cst_22 = arith.constant dense<0.000000e+00> : vector<24x4xf32>
    %27 = tpu.matmul %24, %26, %cst_22 {dimension_numbers = #tpu.dot_dimension_numbers<[1], [0], [0], [1], [0, 0, 1, 1], [], []>} : vector<24x4xbf16>, vector<4x4xbf16>, vector<24x4xf32> -> vector<24x4xf32>
    %28 = arith.addf %21, %27 : vector<24x4xf32>
    %c0_23 = arith.constant 0 : index
    %c7 = arith.constant 7 : index
    %c0_24 = arith.constant 0 : index
    %29 = vector.load %arg1[%c0_23, %c7, %c0_24] : memref<1x42x4xf32, #tpu.memory_space<vmem>>, vector<1x24x4xf32>
    %30 = vector.shape_cast %29 : vector<1x24x4xf32> to vector<24x4xf32>
    %31 = arith.truncf %30 : vector<24x4xf32> to vector<24x4xbf16>
    %c4 = arith.constant 4 : index
    %c0_25 = arith.constant 0 : index
    %c0_26 = arith.constant 0 : index
    %32 = vector.load %arg2[%c4, %c0_25, %c0_26] : memref<9x4x4xbf16, #tpu.memory_space<vmem>>, vector<1x4x4xbf16>
    %33 = vector.shape_cast %32 : vector<1x4x4xbf16> to vector<4x4xbf16>
    %cst_27 = arith.constant dense<0.000000e+00> : vector<24x4xf32>
    %34 = tpu.matmul %31, %33, %cst_27 {dimension_numbers = #tpu.dot_dimension_numbers<[1], [0], [0], [1], [0, 0, 1, 1], [], []>} : vector<24x4xbf16>, vector<4x4xbf16>, vector<24x4xf32> -> vector<24x4xf32>
    %35 = arith.addf %28, %34 : vector<24x4xf32>
    %c0_28 = arith.constant 0 : index
    %c8 = arith.constant 8 : index
    %c0_29 = arith.constant 0 : index
    %36 = vector.load %arg1[%c0_28, %c8, %c0_29] : memref<1x42x4xf32, #tpu.memory_space<vmem>>, vector<1x24x4xf32>
    %37 = vector.shape_cast %36 : vector<1x24x4xf32> to vector<24x4xf32>
    %38 = arith.truncf %37 : vector<24x4xf32> to vector<24x4xbf16>
    %c5 = arith.constant 5 : index
    %c0_30 = arith.constant 0 : index
    %c0_31 = arith.constant 0 : index
    %39 = vector.load %arg2[%c5, %c0_30, %c0_31] : memref<9x4x4xbf16, #tpu.memory_space<vmem>>, vector<1x4x4xbf16>
    %40 = vector.shape_cast %39 : vector<1x4x4xbf16> to vector<4x4xbf16>
    %cst_32 = arith.constant dense<0.000000e+00> : vector<24x4xf32>
    %41 = tpu.matmul %38, %40, %cst_32 {dimension_numbers = #tpu.dot_dimension_numbers<[1], [0], [0], [1], [0, 0, 1, 1], [], []>} : vector<24x4xbf16>, vector<4x4xbf16>, vector<24x4xf32> -> vector<24x4xf32>
    %42 = arith.addf %35, %41 : vector<24x4xf32>
    %c0_33 = arith.constant 0 : index
    %c12 = arith.constant 12 : index
    %c0_34 = arith.constant 0 : index
    %43 = vector.load %arg1[%c0_33, %c12, %c0_34] : memref<1x42x4xf32, #tpu.memory_space<vmem>>, vector<1x24x4xf32>
    %44 = vector.shape_cast %43 : vector<1x24x4xf32> to vector<24x4xf32>
    %45 = arith.truncf %44 : vector<24x4xf32> to vector<24x4xbf16>
    %c6_35 = arith.constant 6 : index
    %c0_36 = arith.constant 0 : index
    %c0_37 = arith.constant 0 : index
    %46 = vector.load %arg2[%c6_35, %c0_36, %c0_37] : memref<9x4x4xbf16, #tpu.memory_space<vmem>>, vector<1x4x4xbf16>
    %47 = vector.shape_cast %46 : vector<1x4x4xbf16> to vector<4x4xbf16>
    %cst_38 = arith.constant dense<0.000000e+00> : vector<24x4xf32>
    %48 = tpu.matmul %45, %47, %cst_38 {dimension_numbers = #tpu.dot_dimension_numbers<[1], [0], [0], [1], [0, 0, 1, 1], [], []>} : vector<24x4xbf16>, vector<4x4xbf16>, vector<24x4xf32> -> vector<24x4xf32>
    %49 = arith.addf %42, %48 : vector<24x4xf32>
    %c0_39 = arith.constant 0 : index
    %c13 = arith.constant 13 : index
    %c0_40 = arith.constant 0 : index
    %50 = vector.load %arg1[%c0_39, %c13, %c0_40] : memref<1x42x4xf32, #tpu.memory_space<vmem>>, vector<1x24x4xf32>
    %51 = vector.shape_cast %50 : vector<1x24x4xf32> to vector<24x4xf32>
    %52 = arith.truncf %51 : vector<24x4xf32> to vector<24x4xbf16>
    %c7_41 = arith.constant 7 : index
    %c0_42 = arith.constant 0 : index
    %c0_43 = arith.constant 0 : index
    %53 = vector.load %arg2[%c7_41, %c0_42, %c0_43] : memref<9x4x4xbf16, #tpu.memory_space<vmem>>, vector<1x4x4xbf16>
    %54 = vector.shape_cast %53 : vector<1x4x4xbf16> to vector<4x4xbf16>
    %cst_44 = arith.constant dense<0.000000e+00> : vector<24x4xf32>
    %55 = tpu.matmul %52, %54, %cst_44 {dimension_numbers = #tpu.dot_dimension_numbers<[1], [0], [0], [1], [0, 0, 1, 1], [], []>} : vector<24x4xbf16>, vector<4x4xbf16>, vector<24x4xf32> -> vector<24x4xf32>
    %56 = arith.addf %49, %55 : vector<24x4xf32>
    %c0_45 = arith.constant 0 : index
    %c14 = arith.constant 14 : index
    %c0_46 = arith.constant 0 : index
    %57 = vector.load %arg1[%c0_45, %c14, %c0_46] : memref<1x42x4xf32, #tpu.memory_space<vmem>>, vector<1x24x4xf32>
    %58 = vector.shape_cast %57 : vector<1x24x4xf32> to vector<24x4xf32>
    %59 = arith.truncf %58 : vector<24x4xf32> to vector<24x4xbf16>
    %c8_47 = arith.constant 8 : index
    %c0_48 = arith.constant 0 : index
    %c0_49 = arith.constant 0 : index
    %60 = vector.load %arg2[%c8_47, %c0_48, %c0_49] : memref<9x4x4xbf16, #tpu.memory_space<vmem>>, vector<1x4x4xbf16>
    %61 = vector.shape_cast %60 : vector<1x4x4xbf16> to vector<4x4xbf16>
    %cst_50 = arith.constant dense<0.000000e+00> : vector<24x4xf32>
    %62 = tpu.matmul %59, %61, %cst_50 {dimension_numbers = #tpu.dot_dimension_numbers<[1], [0], [0], [1], [0, 0, 1, 1], [], []>} : vector<24x4xbf16>, vector<4x4xbf16>, vector<24x4xf32> -> vector<24x4xf32>
    %63 = arith.addf %56, %62 : vector<24x4xf32>
    %c0_51 = arith.constant 0 : index
    %c0_52 = arith.constant 0 : index
    %64 = vector.load %arg3[%c0_51, %c0_52] : memref<1x4xf32, #tpu.memory_space<vmem>>, vector<1x4xf32>
    %65 = vector.broadcast %64 : vector<1x4xf32> to vector<24x4xf32>
    %66 = arith.addf %63, %65 : vector<24x4xf32>
    %cst_53 = arith.constant 0.000000e+00 : f32
    %67 = vector.broadcast %cst_53 : f32 to vector<24x4xf32>
    %68 = arith.maximumf %66, %67 : vector<24x4xf32>
    %c0_54 = arith.constant 0 : index
    %c0_55 = arith.constant 0 : index
    %c0_56 = arith.constant 0 : index
    %69 = vector.load %arg4[%c0_54, %c0_55, %c0_56] : memref<1x24x4xf32, #tpu.memory_space<vmem>>, vector<1x24x4xf32>
    %70 = vector.shape_cast %69 : vector<1x24x4xf32> to vector<24x4xf32>
    %71 = vector.shape_cast %68 : vector<24x4xf32> to vector<1x24x4xf32>
    tpu.vector_store %arg4[%c0_54, %c0_55, %c0_56], %71 {strides = array<i32>} : memref<1x24x4xf32, #tpu.memory_space<vmem>>, vector<1x24x4xf32>,
    return
  }
  func.func @transform_0(%arg0: i32) -> (i32, i32, i32) {
    %c0_i32 = arith.constant 0 : i32
    %c0_i32_0 = arith.constant 0 : i32
    %c0_i32_1 = arith.constant 0 : i32
    return %arg0, %c0_i32, %c0_i32_0 : i32, i32, i32
  }
  func.func @transform_1(%arg0: i32) -> (i32, i32, i32) {
    %c0_i32 = arith.constant 0 : i32
    %c0_i32_0 = arith.constant 0 : i32
    %c0_i32_1 = arith.constant 0 : i32
    %c0_i32_2 = arith.constant 0 : i32
    return %c0_i32, %c0_i32_0, %c0_i32_1 : i32, i32, i32
  }
  func.func @transform_2(%arg0: i32) -> (i32, i32) {
    %c0_i32 = arith.constant 0 : i32
    %c0_i32_0 = arith.constant 0 : i32
    %c0_i32_1 = arith.constant 0 : i32
    return %c0_i32, %c0_i32_0 : i32, i32
  }
  func.func @transform_3(%arg0: i32) -> (i32, i32, i32) {
    %c0_i32 = arith.constant 0 : i32
    %c0_i32_0 = arith.constant 0 : i32
    %c0_i32_1 = arith.constant 0 : i32
    return %arg0, %c0_i32, %c0_i32_0 : i32, i32, i32
  }
}

</mosaic_0001>

<llo_original>
// kernel: tpu_custom_call.1
$region0: #{tpu_custom_call.1}
  #allocation0 [shape = 'u32[]', space=smem, size = 0x4, offset = 0x4, fixed_abs, tag = 'smem constant byte address 0x4 - core index']
  #allocation1 [shape = 'u32[144,128]{1,0:T(1,128)}', space=vmem, size = 0x12000, scoped, tag = 'internal scratch']
  %s0 = inlined_call_operand.vmem [shape: f32[2,42,4], index: 0, kind: input, shape index: {}]
  %s1 = inlined_call_operand.vmem [shape: bf16[9,4,4], index: 1, kind: input, shape index: {}]
  %s2 = inlined_call_operand.vmem [shape: f32[1,4], index: 2, kind: input, shape index: {}]
  %s3 = inlined_call_operand.vmem [shape: f32[2,24,4], index: 3, kind: output, shape index: {}]
  %s4 = sld [smem:[#allocation0]]
  $region45: #{tpu_custom_call.1} parent=0
    _
  %s6 = ssub.s32 1, %s4
  %s7 = scalar_select 0, %s6, %s4
  loop: start=0, step=1, limit=4
  $region2: #{tpu_custom_call.1} parent=0 // loop_pre_header
    _
  $region3: #{tpu_custom_call.1} parent=0 // loop_header
    %s9 = sphi 0, %s13
    %p10 = scmp.ge.s32.totalorder %s9, 4
    %s19 = sphi 0, %s21
    %s22 = sphi 0, %s19
    %s23 = sphi 0, %s22
    %s39 = sphi 0, %s23
    %s43 = sphi 0, %s43
    %s45 = sphi 0, %s43
    %s46 = sphi 0, %s45
    %s60 = sphi 0, %s46
    %s64 = sphi 0, %s64
    %s66 = sphi 0, %s64
    %s67 = sphi 0, %s66
    %s81 = sphi 0, %s67
    %s87 = sphi 0, %s89
    %s90 = sphi 0, %s87
    %s91 = sphi 0, %s90
    %s107 = sphi 0, %s91
  $region4: #{tpu_custom_call.1} parent=0 // loop_header_branch
    %12 = sbr.rel (%p10) target = $region8
  $region5: #{tpu_custom_call.1} parent=0 // loop_body
    %s14 = ssub.s32 %s9, 1
    %s15 = ssub.s32 %s9, 2
    %s16 = sadd.s32 %s9, 1
    %s17 = ssub.s32 %s9, %s16
    %p18 = scmp.eq.s32.totalorder %s17, 0
    %s20 = sadd.s32 %s19, 1
    %s21 = scalar_select %p18, %s19, %s20
    %p24 = pneg %p18
    %p25 = scmp.eq.s32.totalorder %s9, 1
    %p26 = por %p24, %p25
    %p27 = scmp.ne.s32.totalorder %s19, %s22
    %p28 = scmp.eq.s32.totalorder %s9, 0
    %p29 = por %p27, %p28
    %p30 = scmp.ne.s32.totalorder %s19, %s22
    %p31 = scmp.eq.s32.totalorder %s14, 1
    %p32 = por %p30, %p31
    %p33 = scmp.ne.s32.totalorder %s22, %s23
    %p34 = scmp.eq.s32.totalorder %s14, 0
    %p35 = por %p33, %p34
    %p36 = scmp.ne.s32.totalorder %s22, %s23
    %p37 = scmp.eq.s32.totalorder %s15, 1
    %p38 = por %p36, %p37
    %p40 = scmp.ne.s32.totalorder %s23, %s39
    %p41 = scmp.eq.s32.totalorder %s15, 0
    %p42 = por %p40, %p41
    %s44 = sadd.s32 %s43, 1
    %p47 = scmp.eq.s32.totalorder %s9, 1
    %p48 = scmp.ne.s32.totalorder %s43, %s45
    %p49 = scmp.eq.s32.totalorder %s9, 0
    %p50 = por %p48, %p49
    %p51 = scmp.ne.s32.totalorder %s43, %s45
    %p52 = scmp.eq.s32.totalorder %s14, 1
    %p53 = por %p51, %p52
    %p54 = scmp.ne.s32.totalorder %s45, %s46
    %p55 = scmp.eq.s32.totalorder %s14, 0
    %p56 = por %p54, %p55
    %p57 = scmp.ne.s32.totalorder %s45, %s46
    %p58 = scmp.eq.s32.totalorder %s15, 1
    %p59 = por %p57, %p58
    %p61 = scmp.ne.s32.totalorder %s46, %s60
    %p62 = scmp.eq.s32.totalorder %s15, 0
    %p63 = por %p61, %p62
    %s65 = sadd.s32 %s64, 1
    %p68 = scmp.eq.s32.totalorder %s9, 1
    %p69 = scmp.ne.s32.totalorder %s64, %s66
    %p70 = scmp.eq.s32.totalorder %s9, 0
    %p71 = por %p69, %p70
    %p72 = scmp.ne.s32.totalorder %s64, %s66
    %p73 = scmp.eq.s32.totalorder %s14, 1
    %p74 = por %p72, %p73
    %p75 = scmp.ne.s32.totalorder %s66, %s67
    %p76 = scmp.eq.s32.totalorder %s14, 0
    %p77 = por %p75, %p76
    %p78 = scmp.ne.s32.totalorder %s66, %s67
    %p79 = scmp.eq.s32.totalorder %s15, 1
    %p80 = por %p78, %p79
    %p82 = scmp.ne.s32.totalorder %s67, %s81
    %p83 = scmp.eq.s32.totalorder %s15, 0
    %p84 = por %p82, %p83
    %s85 = ssub.s32 %s9, %s16
    %p86 = scmp.eq.s32.totalorder %s85, 0
    %s88 = sadd.s32 %s87, 1
    %s89 = scalar_select %p86, %s87, %s88
    %p92 = pneg %p86
    %p93 = scmp.eq.s32.totalorder %s9, 1
    %p94 = por %p92, %p93
    %p95 = scmp.ne.s32.totalorder %s87, %s90
    %p96 = scmp.eq.s32.totalorder %s9, 0
    %p97 = por %p95, %p96
    %p98 = scmp.ne.s32.totalorder %s87, %s90
    %p99 = scmp.eq.s32.totalorder %s14, 1
    %p100 = por %p98, %p99
    %p101 = scmp.ne.s32.totalorder %s90, %s91
    %p102 = scmp.eq.s32.totalorder %s14, 0
    %p103 = por %p101, %p102
    %p104 = scmp.ne.s32.totalorder %s90, %s91
    %p105 = scmp.eq.s32.totalorder %s15, 1
    %p106 = por %p104, %p105
    %p108 = scmp.ne.s32.totalorder %s91, %s107
    %p109 = scmp.eq.s32.totalorder %s15, 0
    %p110 = por %p108, %p109
    %p111 = scmp.le.s32.totalorder 1, %s9
    %p112 = scmp.lt.s32.totalorder %s9, 3
    %p113 = pnand %p111, %p112
    %p114 = pneg %p113
    // Predicated region
    $region9: #{tpu_custom_call.1} parent=5 // pred_check
      _
    $region10: #{tpu_custom_call.1} parent=5 // pred_check_branch
      %116 = sbr.rel (%p113) target = $region12
    $region11: #{tpu_custom_call.1} parent=5 // pred_region
      %s117 = ssub.s32 %s9, 1
      // Predicated region
      $region13: #{tpu_custom_call.1} parent=11 // pred_check
        %p118 = pneg %p56
      $region14: #{tpu_custom_call.1} parent=11 // pred_check_branch
        %120 = sbr.rel (%p118) target = $region16
      $region15: #{tpu_custom_call.1} parent=11 // pred_region
        _
      $region16: #{tpu_custom_call.1} parent=11 // pred_fallthru
        _
      // Predicated region
      $region17: #{tpu_custom_call.1} parent=11 // pred_check
        %p121 = pneg %p77
      $region18: #{tpu_custom_call.1} parent=11 // pred_check_branch
        %123 = sbr.rel (%p121) target = $region20
      $region19: #{tpu_custom_call.1} parent=11 // pred_region
        _
      $region20: #{tpu_custom_call.1} parent=11 // pred_fallthru
        _
    $region12: #{tpu_custom_call.1} parent=5 // pred_fallthru
      _
    %p124 = scmp.lt.s32.totalorder %s9, 2
    // Predicated region
    $region21: #{tpu_custom_call.1} parent=5 // pred_check
      %p125 = pneg %p124
    $region22: #{tpu_custom_call.1} parent=5 // pred_check_branch
      %127 = sbr.rel (%p125) target = $region24
    $region23: #{tpu_custom_call.1} parent=5 // pred_region
      // Predicated region
      $region25: #{tpu_custom_call.1} parent=23 // pred_check
        %p128 = pneg %p29
      $region26: #{tpu_custom_call.1} parent=23 // pred_check_branch
        %130 = sbr.rel (%p128) target = $region28
      $region27: #{tpu_custom_call.1} parent=23 // pred_region
        %p131 = scmp.lt.s32.totalorder %s9, 1
        %s132 = scalar_select %p131, %s9, 1
        %s133 = smul.addr %s132, 6
        %s134 = smul.addr %s133, 8
        %s135 = scalar_lea.vmem %s0, %s134
      $region28: #{tpu_custom_call.1} parent=23 // pred_fallthru
        _
    $region24: #{tpu_custom_call.1} parent=5 // pred_fallthru
      _
    %p136 = scmp.le.s32.totalorder 1, %s9
    %p137 = scmp.lt.s32.totalorder %s9, 3
    %p138 = pnand %p136, %p137
    %p139 = pneg %p138
    // Predicated region
    $region29: #{tpu_custom_call.1} parent=5 // pred_check
      _
    $region30: #{tpu_custom_call.1} parent=5 // pred_check_branch
      %141 = sbr.rel (%p138) target = $region32
    $region31: #{tpu_custom_call.1} parent=5 // pred_region
      %s142 = ssub.s32 %s9, 1
      %p143 = scmp.lt.s32.totalorder %s14, 1
      %s144 = scalar_select %p143, %s14, 1
      %s145 = smul.addr %s144, 6
      %s146 = smul.addr %s145, 8
      %s147 = scalar_lea.vmem %s0, %s146
      %p148 = pneg %p35
      %p149 = pneg %p32
      %p150 = pneg %p56
      %p151 = pneg %p53
      %p152 = pneg %p77
      %p153 = pneg %p74
      %p154 = pneg %p103
      %p155 = pneg %p100
      %p156 = scmp.lt.s32.totalorder %s14, 1
      %s157 = scalar_select %p156, %s14, 1
      %s158 = smul.addr %s157, 3
      %s159 = smul.addr %s158, 8
      %s160 = scalar_lea.vmem %s3, %s159
      %p161 = scmp.lt.s32.totalorder %s14, 1
      %s162 = scalar_select %p161, %s14, 1
      %s163 = smul.addr %s162, 6
      %s164 = smul.addr %s163, 8
      %s165 = scalar_lea.vmem %s0, %s164
      %p166 = scmp.lt.s32.totalorder %s14, 1
      %s167 = scalar_select %p166, %s14, 1
      %s168 = smul.addr %s167, 3
      %s169 = smul.addr %s168, 8
      %s170 = scalar_lea.vmem %s3, %s169
      %v172 = vld [vmem:[%s165] sm:$0xff]
      %v173 = vld [vmem:[%s165 + $0x8] sm:$0xff]
      %v174 = vld [vmem:[%s165 + $0x10] sm:$0xff]
      %v175 = vpack.c.bf16 %v173, %v172
      %v176 = vpack.c.bf16 %v174, %v174
      %v177 = vld [vmem:[%s1] sm:$0x3]
      %v178 = vld [vmem:[%s165 + $0x1] sm:$0xff]
      %v179 = vld [vmem:[%s165 + $0x9] sm:$0xff]
      %v180 = vld [vmem:[%s165 + $0x11] sm:$0xff]
      %v181 = vpack.c.bf16 %v179, %v178
      %v182 = vpack.c.bf16 %v180, %v180
      %s183 = scalar_lea.vmem %s1, 2
      %v184 = vld [vmem:[%s183] sm:$0x3]
      %vm185 = vcmask 31744
      %v187 = vsel %vm185, %v181, 0
      %v190 = vsel %vm185, %v182, 0
      %vm192 = vcmask 1041408
      %v194 = vsel %vm192, %v184, 0
      %196 = vmatprep.subr.bf16.mxu0 0
      %197 = vmatpush1.bf16.msra.mxu0 %v194
      %198 = vmatprep.subr.bf16.mxu0 0
      %199 = vmatpush1.bf16.msra.mxu0 0
      %200 = vmatprep.subr.bf16.mxu0 0
      %201 = vmatpush1.bf16.msra.mxu0 0
      %202 = vmatprep.subr.bf16.mxu0 0
      %203 = vmatpush1.bf16.msra.mxu0 0
      %204 = vmatprep.subr.bf16.mxu0 0
      %205 = vmatpush1.bf16.msra.mxu0 0
      %206 = vmatprep.subr.bf16.mxu0 0
      %207 = vmatpush1.bf16.msra.mxu0 0
      %208 = vmatprep.subr.bf16.mxu0 0
      %209 = vmatpush1.bf16.msra.mxu0 0
      %210 = vmatprep.subr.bf16.mxu0 0
      %211 = vmatpush1.bf16.msra.mxu0 0
      %212 = vmatprep.subr.bf16.mxu0 0
      %213 = vmatpush1.bf16.msra.mxu0 0
      %214 = vmatprep.subr.bf16.mxu0 0
      %215 = vmatpush1.bf16.msra.mxu0 0
      %216 = vmatprep.subr.bf16.mxu0 0
      %217 = vmatpush1.bf16.msra.mxu0 0
      %218 = vmatprep.subr.bf16.mxu0 0
      %219 = vmatpush1.bf16.msra.mxu0 0
      %220 = vmatprep.subr.bf16.mxu0 0
      %221 = vmatpush1.bf16.msra.mxu0 0
      %222 = vmatprep.subr.bf16.mxu0 0
      %223 = vmatpush1.bf16.msra.mxu0 0
      %224 = vmatprep.subr.bf16.mxu0 0
      %225 = vmatpush1.bf16.msra.mxu0 0
      %226 = vmatprep.subr.bf16.mxu0 0
      %227 = vmatpush1.bf16.msra.mxu0 0
      %228 = vmatprep.mubr.bf16.mxu0 0
      %229 = vmatmul.mubr.bf16.gmra.mrb[0].mxu0 %v187
      %v230 = vpop.f32.mrb[0].mxu0
      %v231 = vadd.f32 0.0, %v230
      %v232 = vpop.f32.mrb[0].mxu0
      %v233 = vpop.f32.mrb[0].mxu0
      %v234 = vadd.f32 0.0, %v233
      %v235 = vpop.f32.mrb[0].mxu0
      %236 = vmatprep.mubr.bf16.mxu0 0
      %237 = vmatmul.mubr.bf16.gmra.mrb[0].mxu0 %v190
      %v238 = vpop.f32.mrb[0].mxu0
      %v239 = vadd.f32 0.0, %v238
      %v240 = vpop.f32.mrb[0].mxu0
      %v241 = vpop.f32.mrb[0].mxu0
      %v242 = vpop.f32.mrb[0].mxu0
      %243 = vdwg.mxu0
      %v245 = vsel %vm185, %v175, 0
      %v248 = vsel %vm185, %v176, 0
      %v251 = vsel %vm192, %v177, 0
      %253 = vmatprep.subr.bf16.mxu0 0
      %254 = vmatpush1.bf16.msra.mxu0 %v251
      %255 = vmatprep.subr.bf16.mxu0 0
      %256 = vmatpush1.bf16.msra.mxu0 0
      %257 = vmatprep.subr.bf16.mxu0 0
      %258 = vmatpush1.bf16.msra.mxu0 0
      %259 = vmatprep.subr.bf16.mxu0 0
      %260 = vmatpush1.bf16.msra.mxu0 0
      %261 = vmatprep.subr.bf16.mxu0 0
      %262 = vmatpush1.bf16.msra.mxu0 0
      %263 = vmatprep.subr.bf16.mxu0 0
      %264 = vmatpush1.bf16.msra.mxu0 0
      %265 = vmatprep.subr.bf16.mxu0 0
      %266 = vmatpush1.bf16.msra.mxu0 0
      %267 = vmatprep.subr.bf16.mxu0 0
      %268 = vmatpush1.bf16.msra.mxu0 0
      %269 = vmatprep.subr.bf16.mxu0 0
      %270 = vmatpush1.bf16.msra.mxu0 0
      %271 = vmatprep.subr.bf16.mxu0 0
      %272 = vmatpush1.bf16.msra.mxu0 0
      %273 = vmatprep.subr.bf16.mxu0 0
      %274 = vmatpush1.bf16.msra.mxu0 0
      %275 = vmatprep.subr.bf16.mxu0 0
      %276 = vmatpush1.bf16.msra.mxu0 0
      %277 = vmatprep.subr.bf16.mxu0 0
      %278 = vmatpush1.bf16.msra.mxu0 0
      %279 = vmatprep.subr.bf16.mxu0 0
      %280 = vmatpush1.bf16.msra.mxu0 0
      %281 = vmatprep.subr.bf16.mxu0 0
      %282 = vmatpush1.bf16.msra.mxu0 0
      %283 = vmatprep.subr.bf16.mxu0 0
      %284 = vmatpush1.bf16.msra.mxu0 0
      %285 = vmatprep.mubr.bf16.mxu0 0
      %286 = vmatmul.mubr.bf16.gmra.mrb[0].mxu0 %v245
      %v287 = vpop.f32.mrb[0].mxu0
      %v288 = vadd.f32 %v231, %v287
      %v289 = vpop.f32.mrb[0].mxu0
      %v290 = vpop.f32.mrb[0].mxu0
      %v291 = vadd.f32 %v234, %v290
      %v292 = vpop.f32.mrb[0].mxu0
      %293 = vmatprep.mubr.bf16.mxu0 0
      %294 = vmatmul.mubr.bf16.gmra.mrb[0].mxu0 %v248
      %v295 = vpop.f32.mrb[0].mxu0
      %v296 = vadd.f32 %v239, %v295
      %v297 = vpop.f32.mrb[0].mxu0
      %v298 = vpop.f32.mrb[0].mxu0
      %v299 = vpop.f32.mrb[0].mxu0
      %300 = vdwg.mxu0
      %v301 = vld [vmem:[%s165 + $0x2] sm:$0xff]
      %v302 = vld [vmem:[%s165 + $0xa] sm:$0xff]
      %v303 = vld [vmem:[%s165 + $0x12] sm:$0xff]
      %v304 = vpack.c.bf16 %v302, %v301
      %v305 = vpack.c.bf16 %v303, %v303
      %s306 = scalar_lea.vmem %s1, 4
      %v307 = vld [vmem:[%s306] sm:$0x3]
      %v309 = vsel %vm185, %v304, 0
      %v312 = vsel %vm185, %v305, 0
      %v315 = vsel %vm192, %v307, 0
      %317 = vmatprep.subr.bf16.mxu0 0
      %318 = vmatpush1.bf16.msra.mxu0 %v315
      %319 = vmatprep.subr.bf16.mxu0 0
      %320 = vmatpush1.bf16.msra.mxu0 0
      %321 = vmatprep.subr.bf16.mxu0 0
      %322 = vmatpush1.bf16.msra.mxu0 0
      %323 = vmatprep.subr.bf16.mxu0 0
      %324 = vmatpush1.bf16.msra.mxu0 0
      %325 = vmatprep.subr.bf16.mxu0 0
      %326 = vmatpush1.bf16.msra.mxu0 0
      %327 = vmatprep.subr.bf16.mxu0 0
      %328 = vmatpush1.bf16.msra.mxu0 0
      %329 = vmatprep.subr.bf16.mxu0 0
      %330 = vmatpush1.bf16.msra.mxu0 0
      %331 = vmatprep.subr.bf16.mxu0 0
      %332 = vmatpush1.bf16.msra.mxu0 0
      %333 = vmatprep.subr.bf16.mxu0 0
      %334 = vmatpush1.bf16.msra.mxu0 0
      %335 = vmatprep.subr.bf16.mxu0 0
      %336 = vmatpush1.bf16.msra.mxu0 0
      %337 = vmatprep.subr.bf16.mxu0 0
      %338 = vmatpush1.bf16.msra.mxu0 0
      %339 = vmatprep.subr.bf16.mxu0 0
      %340 = vmatpush1.bf16.msra.mxu0 0
      %341 = vmatprep.subr.bf16.mxu0 0
      %342 = vmatpush1.bf16.msra.mxu0 0
      %343 = vmatprep.subr.bf16.mxu0 0
      %344 = vmatpush1.bf16.msra.mxu0 0
      %345 = vmatprep.subr.bf16.mxu0 0
      %346 = vmatpush1.bf16.msra.mxu0 0
      %347 = vmatprep.subr.bf16.mxu0 0
      %348 = vmatpush1.bf16.msra.mxu0 0
      %349 = vmatprep.mubr.bf16.mxu0 0
      %350 = vmatmul.mubr.bf16.gmra.mrb[0].mxu0 %v309
      %v351 = vpop.f32.mrb[0].mxu0
      %v352 = vadd.f32 0.0, %v351
      %v353 = vpop.f32.mrb[0].mxu0
      %v354 = vpop.f32.mrb[0].mxu0
      %v355 = vadd.f32 0.0, %v354
      %v356 = vpop.f32.mrb[0].mxu0
      %357 = vmatprep.mubr.bf16.mxu0 0
      %358 = vmatmul.mubr.bf16.gmra.mrb[0].mxu0 %v312
      %v359 = vpop.f32.mrb[0].mxu0
      %v360 = vadd.f32 0.0, %v359
      %v361 = vpop.f32.mrb[0].mxu0
      %v362 = vpop.f32.mrb[0].mxu0
      %v363 = vpop.f32.mrb[0].mxu0
      %364 = vdwg.mxu0
      %v365 = vadd.f32 %v288, %v352
      %v366 = vadd.f32 %v291, %v355
      %v367 = vadd.f32 %v296, %v360
      %v368 = vld [vmem:[%s165 + $0x6] sm:$0xff]
      %v369 = vld [vmem:[%s165 + $0xe] sm:$0xff]
      %v370 = vld [vmem:[%s165 + $0x16] sm:$0xff]
      %v371 = vpack.c.bf16 %v369, %v368
      %v372 = vpack.c.bf16 %v370, %v370
      %s373 = scalar_lea.vmem %s1, 6
      %v374 = vld [vmem:[%s373] sm:$0x3]
      %v376 = vsel %vm185, %v371, 0
      %v379 = vsel %vm185, %v372, 0
      %v382 = vsel %vm192, %v374, 0
      %384 = vmatprep.subr.bf16.mxu0 0
      %385 = vmatpush1.bf16.msra.mxu0 %v382
      %386 = vmatprep.subr.bf16.mxu0 0
      %387 = vmatpush1.bf16.msra.mxu0 0
      %388 = vmatprep.subr.bf16.mxu0 0
      %389 = vmatpush1.bf16.msra.mxu0 0
      %390 = vmatprep.subr.bf16.mxu0 0
      %391 = vmatpush1.bf16.msra.mxu0 0
      %392 = vmatprep.subr.bf16.mxu0 0
      %393 = vmatpush1.bf16.msra.mxu0 0
      %394 = vmatprep.subr.bf16.mxu0 0
      %395 = vmatpush1.bf16.msra.mxu0 0
      %396 = vmatprep.subr.bf16.mxu0 0
      %397 = vmatpush1.bf16.msra.mxu0 0
      %398 = vmatprep.subr.bf16.mxu0 0
      %399 = vmatpush1.bf16.msra.mxu0 0
      %400 = vmatprep.subr.bf16.mxu0 0
      %401 = vmatpush1.bf16.msra.mxu0 0
      %402 = vmatprep.subr.bf16.mxu0 0
      %403 = vmatpush1.bf16.msra.mxu0 0
      %404 = vmatprep.subr.bf16.mxu0 0
      %405 = vmatpush1.bf16.msra.mxu0 0
      %406 = vmatprep.subr.bf16.mxu0 0
      %407 = vmatpush1.bf16.msra.mxu0 0
      %408 = vmatprep.subr.bf16.mxu0 0
      %409 = vmatpush1.bf16.msra.mxu0 0
      %410 = vmatprep.subr.bf16.mxu0 0
      %411 = vmatpush1.bf16.msra.mxu0 0
      %412 = vmatprep.subr.bf16.mxu0 0
      %413 = vmatpush1.bf16.msra.mxu0 0
      %414 = vmatprep.subr.bf16.mxu0 0
      %415 = vmatpush1.bf16.msra.mxu0 0
      %416 = vmatprep.mubr.bf16.mxu0 0
      %417 = vmatmul.mubr.bf16.gmra.mrb[0].mxu0 %v376
      %v418 = vpop.f32.mrb[0].mxu0
      %v419 = vadd.f32 0.0, %v418
      %v420 = vpop.f32.mrb[0].mxu0
      %v421 = vpop.f32.mrb[0].mxu0
      %v422 = vadd.f32 0.0, %v421
      %v423 = vpop.f32.mrb[0].mxu0
      %424 = vmatprep.mubr.bf16.mxu0 0
      %425 = vmatmul.mubr.bf16.gmra.mrb[0].mxu0 %v379
      %v426 = vpop.f32.mrb[0].mxu0
      %v427 = vadd.f32 0.0, %v426
      %v428 = vpop.f32.mrb[0].mxu0
      %v429 = vpop.f32.mrb[0].mxu0
      %v430 = vpop.f32.mrb[0].mxu0
      %431 = vdwg.mxu0
      %v432 = vadd.f32 %v365, %v419
      %v433 = vadd.f32 %v366, %v422
      %v434 = vadd.f32 %v367, %v427
      %v435 = vld [vmem:[%s165 + $0x7] sm:$0xff]
      %v436 = vld [vmem:[%s165 + $0xf] sm:$0xff]
      %v437 = vld [vmem:[%s165 + $0x17] sm:$0xff]
      %v438 = vpack.c.bf16 %v436, %v435
      %v439 = vpack.c.bf16 %v437, %v437
      %s440 = scalar_lea.vmem %s1, 8
      %v441 = vld [vmem:[%s440] sm:$0x3]
      %v443 = vsel %vm185, %v438, 0
      %v446 = vsel %vm185, %v439, 0
      %v449 = vsel %vm192, %v441, 0
      %451 = vmatprep.subr.bf16.mxu0 0
      %452 = vmatpush1.bf16.msra.mxu0 %v449
      %453 = vmatprep.subr.bf16.mxu0 0
      %454 = vmatpush1.bf16.msra.mxu0 0
      %455 = vmatprep.subr.bf16.mxu0 0
      %456 = vmatpush1.bf16.msra.mxu0 0
      %457 = vmatprep.subr.bf16.mxu0 0
      %458 = vmatpush1.bf16.msra.mxu0 0
      %459 = vmatprep.subr.bf16.mxu0 0
      %460 = vmatpush1.bf16.msra.mxu0 0
      %461 = vmatprep.subr.bf16.mxu0 0
      %462 = vmatpush1.bf16.msra.mxu0 0
      %463 = vmatprep.subr.bf16.mxu0 0
      %464 = vmatpush1.bf16.msra.mxu0 0
      %465 = vmatprep.subr.bf16.mxu0 0
      %466 = vmatpush1.bf16.msra.mxu0 0
      %467 = vmatprep.subr.bf16.mxu0 0
      %468 = vmatpush1.bf16.msra.mxu0 0
      %469 = vmatprep.subr.bf16.mxu0 0
      %470 = vmatpush1.bf16.msra.mxu0 0
      %471 = vmatprep.subr.bf16.mxu0 0
      %472 = vmatpush1.bf16.msra.mxu0 0
      %473 = vmatprep.subr.bf16.mxu0 0
      %474 = vmatpush1.bf16.msra.mxu0 0
      %475 = vmatprep.subr.bf16.mxu0 0
      %476 = vmatpush1.bf16.msra.mxu0 0
      %477 = vmatprep.subr.bf16.mxu0 0
      %478 = vmatpush1.bf16.msra.mxu0 0
      %479 = vmatprep.subr.bf16.mxu0 0
      %480 = vmatpush1.bf16.msra.mxu0 0
      %481 = vmatprep.subr.bf16.mxu0 0
      %482 = vmatpush1.bf16.msra.mxu0 0
      %483 = vmatprep.mubr.bf16.mxu0 0
      %484 = vmatmul.mubr.bf16.gmra.mrb[0].mxu0 %v443
      %v485 = vpop.f32.mrb[0].mxu0
      %v486 = vadd.f32 0.0, %v485
      %v487 = vpop.f32.mrb[0].mxu0
      %v488 = vpop.f32.mrb[0].mxu0
      %v489 = vadd.f32 0.0, %v488
      %v490 = vpop.f32.mrb[0].mxu0
      %491 = vmatprep.mubr.bf16.mxu0 0
      %492 = vmatmul.mubr.bf16.gmra.mrb[0].mxu0 %v446
      %v493 = vpop.f32.mrb[0].mxu0
      %v494 = vadd.f32 0.0, %v493
      %v495 = vpop.f32.mrb[0].mxu0
      %v496 = vpop.f32.mrb[0].mxu0
      %v497 = vpop.f32.mrb[0].mxu0
      %498 = vdwg.mxu0
      %v499 = vadd.f32 %v432, %v486
      %v500 = vadd.f32 %v433, %v489
      %v501 = vadd.f32 %v434, %v494
      %v502 = vld [vmem:[%s165 + $0x8] sm:$0xff]
      %v503 = vld [vmem:[%s165 + $0x10] sm:$0xff]
      %v504 = vld [vmem:[%s165 + $0x18] sm:$0xff]
      %v505 = vpack.c.bf16 %v503, %v502
      %v506 = vpack.c.bf16 %v504, %v504
      %s507 = scalar_lea.vmem %s1, 10
      %v508 = vld [vmem:[%s507] sm:$0x3]
      %v510 = vsel %vm185, %v505, 0
      %v513 = vsel %vm185, %v506, 0
      %v516 = vsel %vm192, %v508, 0
      %518 = vmatprep.subr.bf16.mxu0 0
      %519 = vmatpush1.bf16.msra.mxu0 %v516
      %520 = vmatprep.subr.bf16.mxu0 0
      %521 = vmatpush1.bf16.msra.mxu0 0
      %522 = vmatprep.subr.bf16.mxu0 0
      %523 = vmatpush1.bf16.msra.mxu0 0
      %524 = vmatprep.subr.bf16.mxu0 0
      %525 = vmatpush1.bf16.msra.mxu0 0
      %526 = vmatprep.subr.bf16.mxu0 0
      %527 = vmatpush1.bf16.msra.mxu0 0
      %528 = vmatprep.subr.bf16.mxu0 0
      %529 = vmatpush1.bf16.msra.mxu0 0
      %530 = vmatprep.subr.bf16.mxu0 0
      %531 = vmatpush1.bf16.msra.mxu0 0
      %532 = vmatprep.subr.bf16.mxu0 0
      %533 = vmatpush1.bf16.msra.mxu0 0
      %534 = vmatprep.subr.bf16.mxu0 0
      %535 = vmatpush1.bf16.msra.mxu0 0
      %536 = vmatprep.subr.bf16.mxu0 0
      %537 = vmatpush1.bf16.msra.mxu0 0
      %538 = vmatprep.subr.bf16.mxu0 0
      %539 = vmatpush1.bf16.msra.mxu0 0
      %540 = vmatprep.subr.bf16.mxu0 0
      %541 = vmatpush1.bf16.msra.mxu0 0
      %542 = vmatprep.subr.bf16.mxu0 0
      %543 = vmatpush1.bf16.msra.mxu0 0
      %544 = vmatprep.subr.bf16.mxu0 0
      %545 = vmatpush1.bf16.msra.mxu0 0
      %546 = vmatprep.subr.bf16.mxu0 0
      %547 = vmatpush1.bf16.msra.mxu0 0
      %548 = vmatprep.subr.bf16.mxu0 0
      %549 = vmatpush1.bf16.msra.mxu0 0
      %550 = vmatprep.mubr.bf16.mxu0 0
      %551 = vmatmul.mubr.bf16.gmra.mrb[0].mxu0 %v510
      %v552 = vpop.f32.mrb[0].mxu0
      %v553 = vadd.f32 0.0, %v552
      %v554 = vpop.f32.mrb[0].mxu0
      %v555 = vpop.f32.mrb[0].mxu0
      %v556 = vadd.f32 0.0, %v555
      %v557 = vpop.f32.mrb[0].mxu0
      %558 = vmatprep.mubr.bf16.mxu0 0
      %559 = vmatmul.mubr.bf16.gmra.mrb[0].mxu0 %v513
      %v560 = vpop.f32.mrb[0].mxu0
      %v561 = vadd.f32 0.0, %v560
      %v562 = vpop.f32.mrb[0].mxu0
      %v563 = vpop.f32.mrb[0].mxu0
      %v564 = vpop.f32.mrb[0].mxu0
      %565 = vdwg.mxu0
      %v566 = vadd.f32 %v499, %v553
      %v567 = vadd.f32 %v500, %v556
      %v568 = vadd.f32 %v501, %v561
      %v569 = vld [vmem:[%s165 + $0xc] sm:$0xff]
      %v570 = vld [vmem:[%s165 + $0x14] sm:$0xff]
      %v571 = vld [vmem:[%s165 + $0x1c] sm:$0xff]
      %v572 = vpack.c.bf16 %v570, %v569
      %v573 = vpack.c.bf16 %v571, %v571
      %s574 = scalar_lea.vmem %s1, 12
      %v575 = vld [vmem:[%s574] sm:$0x3]
      %v577 = vsel %vm185, %v572, 0
      %v580 = vsel %vm185, %v573, 0
      %v583 = vsel %vm192, %v575, 0
      %585 = vmatprep.subr.bf16.mxu0 0
      %586 = vmatpush1.bf16.msra.mxu0 %v583
      %587 = vmatprep.subr.bf16.mxu0 0
      %588 = vmatpush1.bf16.msra.mxu0 0
      %589 = vmatprep.subr.bf16.mxu0 0
      %590 = vmatpush1.bf16.msra.mxu0 0
      %591 = vmatprep.subr.bf16.mxu0 0
      %592 = vmatpush1.bf16.msra.mxu0 0
      %593 = vmatprep.subr.bf16.mxu0 0
      %594 = vmatpush1.bf16.msra.mxu0 0
      %595 = vmatprep.subr.bf16.mxu0 0
      %596 = vmatpush1.bf16.msra.mxu0 0
      %597 = vmatprep.subr.bf16.mxu0 0
      %598 = vmatpush1.bf16.msra.mxu0 0
      %599 = vmatprep.subr.bf16.mxu0 0
      %600 = vmatpush1.bf16.msra.mxu0 0
      %601 = vmatprep.subr.bf16.mxu0 0
      %602 = vmatpush1.bf16.msra.mxu0 0
      %603 = vmatprep.subr.bf16.mxu0 0
      %604 = vmatpush1.bf16.msra.mxu0 0
      %605 = vmatprep.subr.bf16.mxu0 0
      %606 = vmatpush1.bf16.msra.mxu0 0
      %607 = vmatprep.subr.bf16.mxu0 0
      %608 = vmatpush1.bf16.msra.mxu0 0
      %609 = vmatprep.subr.bf16.mxu0 0
      %610 = vmatpush1.bf16.msra.mxu0 0
      %611 = vmatprep.subr.bf16.mxu0 0
      %612 = vmatpush1.bf16.msra.mxu0 0
      %613 = vmatprep.subr.bf16.mxu0 0
      %614 = vmatpush1.bf16.msra.mxu0 0
      %615 = vmatprep.subr.bf16.mxu0 0
      %616 = vmatpush1.bf16.msra.mxu0 0
      %617 = vmatprep.mubr.bf16.mxu0 0
      %618 = vmatmul.mubr.bf16.gmra.mrb[0].mxu0 %v577
      %v619 = vpop.f32.mrb[0].mxu0
      %v620 = vadd.f32 0.0, %v619
      %v621 = vpop.f32.mrb[0].mxu0
      %v622 = vpop.f32.mrb[0].mxu0
      %v623 = vadd.f32 0.0, %v622
      %v624 = vpop.f32.mrb[0].mxu0
      %625 = vmatprep.mubr.bf16.mxu0 0
      %626 = vmatmul.mubr.bf16.gmra.mrb[0].mxu0 %v580
      %v627 = vpop.f32.mrb[0].mxu0
      %v628 = vadd.f32 0.0, %v627
      %v629 = vpop.f32.mrb[0].mxu0
      %v630 = vpop.f32.mrb[0].mxu0
      %v631 = vpop.f32.mrb[0].mxu0
      %632 = vdwg.mxu0
      %v633 = vadd.f32 %v566, %v620
      %v634 = vadd.f32 %v567, %v623
      %v635 = vadd.f32 %v568, %v628
      %v636 = vld [vmem:[%s165 + $0xd] sm:$0xff]
      %v637 = vld [vmem:[%s165 + $0x15] sm:$0xff]
      %v638 = vld [vmem:[%s165 + $0x1d] sm:$0xff]
      %v639 = vpack.c.bf16 %v637, %v636
      %v640 = vpack.c.bf16 %v638, %v638
      %s641 = scalar_lea.vmem %s1, 14
      %v642 = vld [vmem:[%s641] sm:$0x3]
      %v644 = vsel %vm185, %v639, 0
      %v647 = vsel %vm185, %v640, 0
      %v650 = vsel %vm192, %v642, 0
      %652 = vmatprep.subr.bf16.mxu0 0
      %653 = vmatpush1.bf16.msra.mxu0 %v650
      %654 = vmatprep.subr.bf16.mxu0 0
      %655 = vmatpush1.bf16.msra.mxu0 0
      %656 = vmatprep.subr.bf16.mxu0 0
      %657 = vmatpush1.bf16.msra.mxu0 0
      %658 = vmatprep.subr.bf16.mxu0 0
      %659 = vmatpush1.bf16.msra.mxu0 0
      %660 = vmatprep.subr.bf16.mxu0 0
      %661 = vmatpush1.bf16.msra.mxu0 0
      %662 = vmatprep.subr.bf16.mxu0 0
      %663 = vmatpush1.bf16.msra.mxu0 0
      %664 = vmatprep.subr.bf16.mxu0 0
      %665 = vmatpush1.bf16.msra.mxu0 0
      %666 = vmatprep.subr.bf16.mxu0 0
      %667 = vmatpush1.bf16.msra.mxu0 0
      %668 = vmatprep.subr.bf16.mxu0 0
      %669 = vmatpush1.bf16.msra.mxu0 0
      %670 = vmatprep.subr.bf16.mxu0 0
      %671 = vmatpush1.bf16.msra.mxu0 0
      %672 = vmatprep.subr.bf16.mxu0 0
      %673 = vmatpush1.bf16.msra.mxu0 0
      %674 = vmatprep.subr.bf16.mxu0 0
      %675 = vmatpush1.bf16.msra.mxu0 0
      %676 = vmatprep.subr.bf16.mxu0 0
      %677 = vmatpush1.bf16.msra.mxu0 0
      %678 = vmatprep.subr.bf16.mxu0 0
      %679 = vmatpush1.bf16.msra.mxu0 0
      %680 = vmatprep.subr.bf16.mxu0 0
      %681 = vmatpush1.bf16.msra.mxu0 0
      %682 = vmatprep.subr.bf16.mxu0 0
      %683 = vmatpush1.bf16.msra.mxu0 0
      %684 = vmatprep.mubr.bf16.mxu0 0
      %685 = vmatmul.mubr.bf16.gmra.mrb[0].mxu0 %v644
      %v686 = vpop.f32.mrb[0].mxu0
      %v687 = vadd.f32 0.0, %v686
      %v688 = vpop.f32.mrb[0].mxu0
      %v689 = vpop.f32.mrb[0].mxu0
      %v690 = vadd.f32 0.0, %v689
      %v691 = vpop.f32.mrb[0].mxu0
      %692 = vmatprep.mubr.bf16.mxu0 0
      %693 = vmatmul.mubr.bf16.gmra.mrb[0].mxu0 %v647
      %v694 = vpop.f32.mrb[0].mxu0
      %v695 = vadd.f32 0.0, %v694
      %v696 = vpop.f32.mrb[0].mxu0
      %v697 = vpop.f32.mrb[0].mxu0
      %v698 = vpop.f32.mrb[0].mxu0
      %699 = vdwg.mxu0
      %v700 = vadd.f32 %v633, %v687
      %v701 = vadd.f32 %v634, %v690
      %v702 = vadd.f32 %v635, %v695
      %v703 = vld [vmem:[%s165 + $0xe] sm:$0xff]
      %v704 = vld [vmem:[%s165 + $0x16] sm:$0xff]
      %v705 = vld [vmem:[%s165 + $0x1e] sm:$0xff]
      %v706 = vpack.c.bf16 %v704, %v703
      %v707 = vpack.c.bf16 %v705, %v705
      %s708 = scalar_lea.vmem %s1, 16
      %v709 = vld [vmem:[%s708] sm:$0x3]
      %v711 = vsel %vm185, %v706, 0
      %v714 = vsel %vm185, %v707, 0
      %v717 = vsel %vm192, %v709, 0
      %719 = vmatprep.subr.bf16.mxu0 0
      %720 = vmatpush1.bf16.msra.mxu0 %v717
      %721 = vmatprep.subr.bf16.mxu0 0
      %722 = vmatpush1.bf16.msra.mxu0 0
      %723 = vmatprep.subr.bf16.mxu0 0
      %724 = vmatpush1.bf16.msra.mxu0 0
      %725 = vmatprep.subr.bf16.mxu0 0
      %726 = vmatpush1.bf16.msra.mxu0 0
      %727 = vmatprep.subr.bf16.mxu0 0
      %728 = vmatpush1.bf16.msra.mxu0 0
      %729 = vmatprep.subr.bf16.mxu0 0
      %730 = vmatpush1.bf16.msra.mxu0 0
      %731 = vmatprep.subr.bf16.mxu0 0
      %732 = vmatpush1.bf16.msra.mxu0 0
      %733 = vmatprep.subr.bf16.mxu0 0
      %734 = vmatpush1.bf16.msra.mxu0 0
      %735 = vmatprep.subr.bf16.mxu0 0
      %736 = vmatpush1.bf16.msra.mxu0 0
      %737 = vmatprep.subr.bf16.mxu0 0
      %738 = vmatpush1.bf16.msra.mxu0 0
      %739 = vmatprep.subr.bf16.mxu0 0
      %740 = vmatpush1.bf16.msra.mxu0 0
      %741 = vmatprep.subr.bf16.mxu0 0
      %742 = vmatpush1.bf16.msra.mxu0 0
      %743 = vmatprep.subr.bf16.mxu0 0
      %744 = vmatpush1.bf16.msra.mxu0 0
      %745 = vmatprep.subr.bf16.mxu0 0
      %746 = vmatpush1.bf16.msra.mxu0 0
      %747 = vmatprep.subr.bf16.mxu0 0
      %748 = vmatpush1.bf16.msra.mxu0 0
      %749 = vmatprep.subr.bf16.mxu0 0
      %750 = vmatpush1.bf16.msra.mxu0 0
      %751 = vmatprep.mubr.bf16.mxu0 0
      %752 = vmatmul.mubr.bf16.gmra.mrb[0].mxu0 %v711
      %v753 = vpop.f32.mrb[0].mxu0
      %v754 = vadd.f32 0.0, %v753
      %v755 = vpop.f32.mrb[0].mxu0
      %v756 = vpop.f32.mrb[0].mxu0
      %v757 = vadd.f32 0.0, %v756
      %v758 = vpop.f32.mrb[0].mxu0
      %759 = vmatprep.mubr.bf16.mxu0 0
      %760 = vmatmul.mubr.bf16.gmra.mrb[0].mxu0 %v714
      %v761 = vpop.f32.mrb[0].mxu0
      %v762 = vadd.f32 0.0, %v761
      %v763 = vpop.f32.mrb[0].mxu0
      %v764 = vpop.f32.mrb[0].mxu0
      %v765 = vpop.f32.mrb[0].mxu0
      %766 = vdwg.mxu0
      %v767 = vadd.f32 %v700, %v754
      %v768 = vadd.f32 %v701, %v757
      %v769 = vadd.f32 %v702, %v762
      %v770 = vld [vmem:[%s2] sm:$0x1]
      %v772 = vlaneseq
      %v773 = vshrl.u32 %v772, 7
      %v774 = vsub.s32 0, %v773
      %v775 = vrot.slane %v770, %v774
      %v777 = vadd.f32 %v767, %v775
      %v778 = vadd.f32 %v768, %v775
      %v779 = vadd.f32 %v769, %v775
      %v780 = vmax.f32 %v777, 0.0
      %v781 = vmax.f32 %v778, 0.0
      %v782 = vmax.f32 %v779, 0.0
      %783 = vst.msk [vmem:[%s170] sm:$0xff] %vm185, %v780
      %784 = vst.msk [vmem:[%s170 + $0x8] sm:$0xff] %vm185, %v781
      %785 = vst.msk [vmem:[%s170 + $0x10] sm:$0xff] %vm185, %v782
      %p786 = scmp.lt.s32.totalorder %s14, 1
      %s787 = scalar_select %p786, %s14, 1
      %s788 = smul.addr %s787, 3
      %s789 = smul.addr %s788, 8
      %s790 = scalar_lea.vmem %s3, %s789
      // Predicated region
      $region33: #{tpu_custom_call.1} parent=31 // pred_check
        %p791 = pneg %p100
      $region34: #{tpu_custom_call.1} parent=31 // pred_check_branch
        %793 = sbr.rel (%p791) target = $region36
      $region35: #{tpu_custom_call.1} parent=31 // pred_region
        _
      $region36: #{tpu_custom_call.1} parent=31 // pred_fallthru
        _
    $region32: #{tpu_custom_call.1} parent=5 // pred_fallthru
      _
    %p794 = scmp.le.s32.totalorder 2, %s9
    // Predicated region
    $region37: #{tpu_custom_call.1} parent=5 // pred_check
      %p795 = pneg %p794
    $region38: #{tpu_custom_call.1} parent=5 // pred_check_branch
      %797 = sbr.rel (%p795) target = $region40
    $region39: #{tpu_custom_call.1} parent=5 // pred_region
      %s798 = ssub.s32 %s9, 2
      // Predicated region
      $region41: #{tpu_custom_call.1} parent=39 // pred_check
        %p799 = pneg %p106
      $region42: #{tpu_custom_call.1} parent=39 // pred_check_branch
        %801 = sbr.rel (%p799) target = $region44
      $region43: #{tpu_custom_call.1} parent=39 // pred_region
        %p802 = scmp.lt.s32.totalorder %s15, 1
        %s803 = scalar_select %p802, %s15, 1
        %s804 = smul.addr %s803, 3
        %s805 = smul.addr %s804, 8
        %s806 = scalar_lea.vmem %s3, %s805
      $region44: #{tpu_custom_call.1} parent=39 // pred_fallthru
        _
    $region40: #{tpu_custom_call.1} parent=5 // pred_fallthru
      _
  $region6: #{tpu_custom_call.1} parent=0 // loop_footer
    %s13 = sadd.s32 1, %s9
  $region7: #{tpu_custom_call.1} parent=0 // loop_footer_branch
    %8 = sbr.rel target = $region3
  $region8: #{tpu_custom_call.1} parent=0 // loop_exit
    _

</llo_original>
